<compile_context>
chip_gen: v5e
topology: v5e:2x2
jax: 0.10.0
libtpu: 0.0.40
codegen_flags: <defaults>
</compile_context>

<pallas_src>
import functools

import jax
import jax.numpy as jnp
from jax.experimental import pallas as pl
from jax.experimental.pallas import tpu as pltpu


def _round_up(x, m):
    return (x + m - 1) // m * m


def _dyn_linear_kernel(x_ref, w_ref, b_ref, o_ref, acc_ref):
    """One (tm, tn) output tile; grid axis 2 reduces over K."""
    k = pl.program_id(2)

    @pl.when(k == 0)
    def _():
        # Fold bias into the accumulator init (b_ref is (1, tn) f32).
        acc_ref[...] = jnp.broadcast_to(b_ref[...], acc_ref.shape)

    acc_ref[...] += jnp.dot(
        x_ref[...], w_ref[...], preferred_element_type=jnp.float32
    )

    @pl.when(k == pl.num_programs(2) - 1)
    def _():
        o_ref[...] = acc_ref[...].astype(o_ref.dtype)


@functools.partial(jax.jit, static_argnames=("tm", "tn", "tk", "n_blocks"))
def _dyn_linear_pallas(x_p, w_p, b_p, *, tm, tn, tk, n_blocks):
    """x_p: (Mp, Kp) bf16, w_p: (Kmax_p, Nmax_p) bf16, b_p: (1, Nmax_p) f32.

    Only the first Kp/tk K-blocks and first n_blocks N-blocks of w_p/b_p are
    touched; the rest of the packed weight is never read.
    """
    Mp, Kp = x_p.shape
    Np = n_blocks * tn
    grid = (Mp // tm, n_blocks, Kp // tk)

    flops = 2 * Mp * Kp * Np
    bytes_accessed = (
        Mp * Kp * x_p.dtype.itemsize
        + Kp * Np * w_p.dtype.itemsize
        + Np * b_p.dtype.itemsize
        + Mp * Np * 4
    )

    return pl.pallas_call(
        _dyn_linear_kernel,
        out_shape=jax.ShapeDtypeStruct((Mp, Np), jnp.float32),
        grid_spec=pltpu.PrefetchScalarGridSpec(
            num_scalar_prefetch=0,
            grid=grid,
            in_specs=[
                pl.BlockSpec((tm, tk), lambda i, j, k: (i, k)),   # x tile
                pl.BlockSpec((tk, tn), lambda i, j, k: (k, j)),   # packed W tile
                pl.BlockSpec((1, tn), lambda i, j, k: (0, j)),    # bias row
            ],
            out_specs=pl.BlockSpec((tm, tn), lambda i, j, k: (i, j)),
            scratch_shapes=[pltpu.VMEM((tm, tn), jnp.float32)],
        ),
        compiler_params=pltpu.CompilerParams(
            dimension_semantics=("parallel", "parallel", "arbitrary")
        ),
        cost_estimate=pl.CostEstimate(
            flops=flops, transcendentals=0, bytes_accessed=bytes_accessed
        ),
    )(x_p, w_p, b_p)


class DynamicLinear:
    """JAX/Pallas port of pytorch_nndct DynamicLinear."""

    def __init__(self, max_in_features, max_out_features, bias=True, key=None,
                 compute_dtype=jnp.bfloat16):
        self.max_in_features = max_in_features
        self.max_out_features = max_out_features
        self.bias = bias
        self.active_out_features = max_out_features
        self.compute_dtype = compute_dtype

        if key is None:
            key = jax.random.PRNGKey(0)
        kw, kb = jax.random.split(key)
        # Canonical parameters in nn.Linear layout: weight (out, in), bias (out,).
        bound = 1.0 / jnp.sqrt(jnp.float32(max_in_features))
        self.weight = jax.random.uniform(
            kw, (max_out_features, max_in_features), jnp.float32, -bound, bound
        )
        self.bias_param = (
            jax.random.uniform(kb, (max_out_features,), jnp.float32, -bound, bound)
            if bias
            else None
        )

        # Tile sizes derived once from the max dims (N/K) — K/N tiles are static
        # per layer so the kernel is not re-specialized on dynamic widths.
        self._tk = min(_round_up(max_in_features, 128), 512)
        self._tn = min(_round_up(max_out_features, 128), 512)
        kmax_p = _round_up(max_in_features, self._tk)
        nmax_p = _round_up(max_out_features, self._tn)

        # One-time packing: transpose to (K, N), pad to tile multiples, cast bf16.
        self._w_packed = (
            jnp.zeros((kmax_p, nmax_p), compute_dtype)
            .at[:max_in_features, :max_out_features]
            .set(self.weight.T.astype(compute_dtype))
        )
        b = self.bias_param if self.bias else jnp.zeros(
            (max_out_features,), jnp.float32
        )
        self._b_packed = (
            jnp.zeros((1, nmax_p), jnp.float32)
            .at[0, :max_out_features]
            .set(b.astype(jnp.float32))
        )

    def get_active_weight(self, out_features, in_features):
        return self.weight[:out_features, :in_features]

    def get_active_bias(self, out_features):
        return self.bias_param[:out_features] if self.bias else None

    def __call__(self, x, out_features=None):
        if out_features is None:
            out_features = self.active_out_features
        M, in_features = x.shape
        assert in_features <= self.max_in_features
        assert out_features <= self.max_out_features

        tk, tn = self._tk, self._tn
        tm = min(_round_up(max(M, 1), 8), 256)
        Mp = _round_up(M, tm)
        Kp = _round_up(in_features, tk)          # <= padded weight K dim
        n_blocks = (out_features + tn - 1) // tn  # <= padded weight N blocks

        # Only x (small) is padded per call; zero K-padding makes the ragged
        # contraction edge exact even though the packed weight holds real
        # values in rows [in_features, Kp).
        x_p = (
            jnp.zeros((Mp, Kp), self.compute_dtype)
            .at[:M, :in_features]
            .set(x.astype(self.compute_dtype))
        )

        y_p = _dyn_linear_pallas(
            x_p, self._w_packed, self._b_packed,
            tm=tm, tn=tn, tk=tk, n_blocks=n_blocks,
        )
        return y_p[:M, :out_features].astype(x.dtype)


if __name__ == "__main__":
    key = jax.random.PRNGKey(0)
    k_mod, k_x = jax.random.split(key)

    max_in, max_out = 32, 48
    batch, in_features, out_features = 4, 24, 20

    layer = DynamicLinear(max_in, max_out, bias=True, key=k_mod)
    x = jax.random.normal(k_x, (batch, in_features), jnp.float32)

    # Sliced path.
    y = jax.block_until_ready(layer(x, out_features=out_features))

    # Reference (pure JAX, f32) of F.linear semantics; kernel uses bf16 inputs
    # with f32 accumulation, so allow a modest tolerance.
    w_ref = layer.weight[:out_features, :in_features]
    b_ref = layer.bias_param[:out_features]
    y_ref = x @ w_ref.T + b_ref
    assert y.shape == (batch, out_features)
    assert jnp.allclose(y, y_ref, atol=2e-2, rtol=2e-2), (
        float(jnp.max(jnp.abs(y - y_ref)))
    )

    # Default path (out_features = active_out_features = max_out) with full
    # in_features — reuses the same compiled kernel (same static tile config).
    x_full = jax.random.normal(k_x, (batch, max_in), jnp.float32)
    y2 = jax.block_until_ready(layer(x_full))
    y2_ref = x_full @ layer.weight.T + layer.bias_param
    assert y2.shape == (batch, max_out)
    assert jnp.allclose(y2, y2_ref, atol=2e-2, rtol=2e-2)

    print("KERNEL_OK")
</pallas_src>

<mosaic_0001>
module attributes {stable_mosaic.version = 11 : i64} {
  func.func @_dyn_linear_kernel(%arg0: i32, %arg1: i32, %arg2: i32, %arg3: memref<8x128xbf16, #tpu.memory_space<vmem>>, %arg4: memref<128x128xbf16, #tpu.memory_space<vmem>>, %arg5: memref<1x128xf32, #tpu.memory_space<vmem>>, %arg6: memref<8x128xf32, #tpu.memory_space<vmem>>, %arg7: memref<8x128xf32, #tpu.memory_space<vmem>>) attributes {dimension_semantics = [#tpu.dimension_semantics<parallel>, #tpu.dimension_semantics<parallel>, #tpu.dimension_semantics<arbitrary>], iteration_bounds = array<i64: 1, 1, 1>, scalar_prefetch = 0 : i64, scratch_operands = 1 : i64, tpu.core_type = #tpu.core_type<tc>, window_params = [{transform_indices = @transform_0, window_bounds = array<i64: 8, 128>}, {transform_indices = @transform_1, window_bounds = array<i64: 128, 128>}, {transform_indices = @transform_2, window_bounds = array<i64: 1, 128>}, {transform_indices = @transform_3, window_bounds = array<i64: 8, 128>}]} {
    %c0_i32 = arith.constant 0 : i32
    %0 = arith.cmpi eq, %arg2, %c0_i32 : i32
    %1 = arith.extui %0 : i1 to i32
    %c0_i32_0 = arith.constant 0 : i32
    %2 = arith.cmpi ne, %1, %c0_i32_0 : i32
    scf.if %2 {
      %c0_10 = arith.constant 0 : index
      %c0_11 = arith.constant 0 : index
      %12 = vector.load %arg5[%c0_10, %c0_11] : memref<1x128xf32, #tpu.memory_space<vmem>>, vector<1x128xf32>
      %13 = vector.shape_cast %12 : vector<1x128xf32> to vector<1x128xf32>
      %14 = vector.broadcast %13 : vector<1x128xf32> to vector<8x128xf32>
      %c0_12 = arith.constant 0 : index
      %c0_13 = arith.constant 0 : index
      %15 = vector.load %arg7[%c0_12, %c0_13] : memref<8x128xf32, #tpu.memory_space<vmem>>, vector<8x128xf32>
      tpu.vector_store %arg7[%c0_12, %c0_13], %14 {strides = array<i32>} : memref<8x128xf32, #tpu.memory_space<vmem>>, vector<8x128xf32>,
    } else {
    }
    %c0 = arith.constant 0 : index
    %c0_1 = arith.constant 0 : index
    %3 = vector.load %arg7[%c0, %c0_1] : memref<8x128xf32, #tpu.memory_space<vmem>>, vector<8x128xf32>
    %c0_2 = arith.constant 0 : index
    %c0_3 = arith.constant 0 : index
    %4 = vector.load %arg3[%c0_2, %c0_3] : memref<8x128xbf16, #tpu.memory_space<vmem>>, vector<8x128xbf16>
    %c0_4 = arith.constant 0 : index
    %c0_5 = arith.constant 0 : index
    %5 = vector.load %arg4[%c0_4, %c0_5] : memref<128x128xbf16, #tpu.memory_space<vmem>>, vector<128x128xbf16>
    %cst = arith.constant dense<0.000000e+00> : vector<8x128xf32>
    %6 = tpu.matmul %4, %5, %cst {dimension_numbers = #tpu.dot_dimension_numbers<[1], [0], [0], [1], [0, 0, 1, 1], [], []>} : vector<8x128xbf16>, vector<128x128xbf16>, vector<8x128xf32> -> vector<8x128xf32>
    %7 = arith.addf %3, %6 : vector<8x128xf32>
    %c0_6 = arith.constant 0 : index
    %c0_7 = arith.constant 0 : index
    %8 = vector.load %arg7[%c0_6, %c0_7] : memref<8x128xf32, #tpu.memory_space<vmem>>, vector<8x128xf32>
    tpu.vector_store %arg7[%c0_6, %c0_7], %7 {strides = array<i32>} : memref<8x128xf32, #tpu.memory_space<vmem>>, vector<8x128xf32>,
    %c0_i32_8 = arith.constant 0 : i32
    %9 = arith.cmpi eq, %arg2, %c0_i32_8 : i32
    %10 = arith.extui %9 : i1 to i32
    %c0_i32_9 = arith.constant 0 : i32
    %11 = arith.cmpi ne, %10, %c0_i32_9 : i32
    scf.if %11 {
      %c0_10 = arith.constant 0 : index
      %c0_11 = arith.constant 0 : index
      %12 = vector.load %arg7[%c0_10, %c0_11] : memref<8x128xf32, #tpu.memory_space<vmem>>, vector<8x128xf32>
      %c0_12 = arith.constant 0 : index
      %c0_13 = arith.constant 0 : index
      %13 = vector.load %arg6[%c0_12, %c0_13] : memref<8x128xf32, #tpu.memory_space<vmem>>, vector<8x128xf32>
      tpu.vector_store %arg6[%c0_12, %c0_13], %12 {strides = array<i32>} : memref<8x128xf32, #tpu.memory_space<vmem>>, vector<8x128xf32>,
    } else {
    }
    return
  }
  func.func @transform_0(%arg0: i32, %arg1: i32, %arg2: i32) -> (i32, i32) {
    %c0_i32 = arith.constant 0 : i32
    return %arg0, %arg2 : i32, i32
  }
  func.func @transform_1(%arg0: i32, %arg1: i32, %arg2: i32) -> (i32, i32) {
    %c0_i32 = arith.constant 0 : i32
    return %arg2, %arg1 : i32, i32
  }
  func.func @transform_2(%arg0: i32, %arg1: i32, %arg2: i32) -> (i32, i32) {
    %c0_i32 = arith.constant 0 : i32
    %c0_i32_0 = arith.constant 0 : i32
    return %c0_i32, %arg1 : i32, i32
  }
  func.func @transform_3(%arg0: i32, %arg1: i32, %arg2: i32) -> (i32, i32) {
    %c0_i32 = arith.constant 0 : i32
    return %arg0, %arg1 : i32, i32
  }
}

</mosaic_0001>

<llo_original>
// kernel: _dyn_linear_pallas.1
$region0: #{_dyn_linear_pallas.1}
  #allocation0 [shape = 'u32[]', space=smem, size = 0x4, offset = 0x4, fixed_abs, tag = 'smem constant byte address 0x4 - core index']
  #allocation1 [shape = 'u32[72,128]{1,0:T(1,128)}', space=vmem, size = 0x9000, scoped, tag = 'internal scratch']
  #allocation2 [shape = 'f32[8,128]{1,0:T(8,128)}', space=vmem, size = 0x1000, scoped, tag = 'scratch operand']
  %s0 = inlined_call_operand.hbm [shape: bf16[8,128], index: 0, kind: input, shape index: {}]
  %s1 = inlined_call_operand.hbm [shape: bf16[128,128], index: 1, kind: input, shape index: {}]
  %s2 = inlined_call_operand.vmem [shape: f32[1,128], index: 2, kind: input, shape index: {}]
  %s3 = inlined_call_operand.hbm [shape: f32[8,128], index: 3, kind: output, shape index: {}]
  %s4 = sld [smem:[#allocation0]]
  $region38: #{_dyn_linear_pallas.1} parent=0
    _
  %s6 = ssub.s32 1, %s4
  %s7 = scalar_select 0, %s6, %s4
  $region1: #{_dyn_linear_pallas.1} parent=0
    #allocation3 [shape = 'u8[2048]{0}', space=vmem, size = 0x800, scoped, tag = 'input window, operand 0, single buffered']
    #allocation4 [shape = 's32[1]{0}', space=sflag, size = 0x4, scoped, tag = 'scoped memory for _dyn_linear_pallas.1']
    #allocation5 [shape = 's32[1]{0}', space=sflag, size = 0x4, scoped, tag = 'scoped memory for _dyn_linear_pallas.1']
    #allocation6 [shape = 'u8[32768]{0}', space=vmem, size = 0x8000, scoped, tag = 'input window, operand 1, single buffered']
    #allocation7 [shape = 's32[1]{0}', space=sflag, size = 0x4, scoped, tag = 'scoped memory for _dyn_linear_pallas.1']
    #allocation8 [shape = 'u8[4096]{0}', space=vmem, size = 0x1000, scoped, tag = 'output window, operand 0, single buffered']
    %8 = vsyncpa [#allocation4], 0
    %9 = vsyncpa [#allocation7], 0
    %10 = vsyncpa [#allocation5], 0
    // Predicated region
    $region2: #{_dyn_linear_pallas.1} parent=1 // pred_check
      _
    $region3: #{_dyn_linear_pallas.1} parent=1 // pred_check_branch
      %12 = sbr.rel (0) target = $region5
    $region4: #{_dyn_linear_pallas.1} parent=1 // pred_region
      %14 = vsyncadd [#allocation4], 0
      %s16 = sshll.u32 %s0, 4
      %s17 = int_to_ptr.hbm [resolvable:$true] %s16
      %s18 = sshll.u32 [#allocation3], 4
      %s19 = int_to_ptr.vmem [resolvable:$true] %s18
      %21 = dma.hbm_to_vmem [thread:$0]  %s17, 64, %s19, [#allocation4]
    $region5: #{_dyn_linear_pallas.1} parent=1 // pred_fallthru
      _
    // Predicated region
    $region6: #{_dyn_linear_pallas.1} parent=1 // pred_check
      _
    $region7: #{_dyn_linear_pallas.1} parent=1 // pred_check_branch
      %23 = sbr.rel (0) target = $region9
    $region8: #{_dyn_linear_pallas.1} parent=1 // pred_region
      %25 = vsyncadd [#allocation7], 0
      %s26 = sshll.u32 %s1, 4
      %s27 = int_to_ptr.hbm [resolvable:$true] %s26
      %s28 = sshll.u32 [#allocation6], 4
      %s29 = int_to_ptr.vmem [resolvable:$true] %s28
      %34 = dma.hbm_to_vmem [thread:$0]  %s27, 1024, %s29, [#allocation7], 64, 64, 4
    $region9: #{_dyn_linear_pallas.1} parent=1 // pred_fallthru
      _
    // Predicated region
    $region10: #{_dyn_linear_pallas.1} parent=1 // pred_check
      _
    $region11: #{_dyn_linear_pallas.1} parent=1 // pred_check_branch
      %36 = sbr.rel (0) target = $region13
    $region12: #{_dyn_linear_pallas.1} parent=1 // pred_region
      _
    $region13: #{_dyn_linear_pallas.1} parent=1 // pred_fallthru
      _
    // Predicated region
    $region14: #{_dyn_linear_pallas.1} parent=1 // pred_check
      _
    $region15: #{_dyn_linear_pallas.1} parent=1 // pred_check_branch
      %38 = sbr.rel (0) target = $region17
    $region16: #{_dyn_linear_pallas.1} parent=1 // pred_region
      %40 = dma.done [#allocation4], 64
    $region17: #{_dyn_linear_pallas.1} parent=1 // pred_fallthru
      _
    // Predicated region
    $region18: #{_dyn_linear_pallas.1} parent=1 // pred_check
      _
    $region19: #{_dyn_linear_pallas.1} parent=1 // pred_check_branch
      %42 = sbr.rel (0) target = $region21
    $region20: #{_dyn_linear_pallas.1} parent=1 // pred_region
      %44 = dma.done [#allocation7], 1024
    $region21: #{_dyn_linear_pallas.1} parent=1 // pred_fallthru
      _
    %p45 = scmp.eq.s32.totalorder 0, 0
    // Predicated region
    $region22: #{_dyn_linear_pallas.1} parent=1 // pred_check
      %p46 = pneg %p45
    $region23: #{_dyn_linear_pallas.1} parent=1 // pred_check_branch
      %48 = sbr.rel (%p46) target = $region25
    $region24: #{_dyn_linear_pallas.1} parent=1 // pred_region
      %v49 = vld [vmem:[%s2] sm:$0x1]
      %v51 = vperm.slane %v49, 0
      %53 = vst [vmem:[#allocation2] sm:$0xff] %v51
    $region25: #{_dyn_linear_pallas.1} parent=1 // pred_fallthru
      _
    %v54 = vld [vmem:[#allocation2] sm:$0xff]
    %v55 = vld [vmem:[#allocation3] sm:$0xf]
    %v56 = vld [vmem:[#allocation6] sm:$0xf]
    %v57 = vld [vmem:[#allocation6 + $0x4] sm:$0xf]
    %v58 = vld [vmem:[#allocation6 + $0x8] sm:$0xf]
    %v59 = vld [vmem:[#allocation6 + $0xc] sm:$0xf]
    %v60 = vld [vmem:[#allocation6 + $0x10] sm:$0xf]
    %v61 = vld [vmem:[#allocation6 + $0x14] sm:$0xf]
    %v62 = vld [vmem:[#allocation6 + $0x18] sm:$0xf]
    %v63 = vld [vmem:[#allocation6 + $0x1c] sm:$0xf]
    %v64 = vld [vmem:[#allocation6 + $0x20] sm:$0xf]
    %v65 = vld [vmem:[#allocation6 + $0x24] sm:$0xf]
    %v66 = vld [vmem:[#allocation6 + $0x28] sm:$0xf]
    %v67 = vld [vmem:[#allocation6 + $0x2c] sm:$0xf]
    %v68 = vld [vmem:[#allocation6 + $0x30] sm:$0xf]
    %v69 = vld [vmem:[#allocation6 + $0x34] sm:$0xf]
    %v70 = vld [vmem:[#allocation6 + $0x38] sm:$0xf]
    %v71 = vld [vmem:[#allocation6 + $0x3c] sm:$0xf]
    %v88 = vunpack.c.l.b16 %v56
    %v89 = vunpack.c.l.b16 %v57
    %v90 = vunpack.c.l.b16 %v58
    %v91 = vunpack.c.l.b16 %v59
    %v92 = vunpack.c.l.b16 %v60
    %v93 = vunpack.c.l.b16 %v61
    %v94 = vunpack.c.l.b16 %v62
    %v95 = vunpack.c.l.b16 %v63
    %v96 = vunpack.c.l.b16 %v64
    %v97 = vunpack.c.l.b16 %v65
    %v98 = vunpack.c.l.b16 %v66
    %v99 = vunpack.c.l.b16 %v67
    %v100 = vunpack.c.l.b16 %v68
    %v101 = vunpack.c.l.b16 %v69
    %v102 = vunpack.c.l.b16 %v70
    %v103 = vunpack.c.l.b16 %v71
    %v104 = vpack.c.b16 %v89, %v88
    %v105 = vpack.c.b16 %v91, %v90
    %v106 = vpack.c.b16 %v93, %v92
    %v107 = vpack.c.b16 %v95, %v94
    %v108 = vpack.c.b16 %v97, %v96
    %v109 = vpack.c.b16 %v99, %v98
    %v110 = vpack.c.b16 %v101, %v100
    %v111 = vpack.c.b16 %v103, %v102
    %120 = vmatpush.bf16.msra.mxu0 %v111
    %121 = vmatpush.bf16.msra.mxu0 %v110
    %122 = vmatpush.bf16.msra.mxu0 %v109
    %123 = vmatpush.bf16.msra.mxu0 %v108
    %124 = vmatpush.bf16.msra.mxu0 %v107
    %125 = vmatpush.bf16.msra.mxu0 %v106
    %126 = vmatpush.bf16.msra.mxu0 %v105
    %127 = vmatpush.bf16.msra.mxu0 %v104
    %128 = vmatmul.bf16.gmra.mxu0 %v55
    %v129 = vpop.f32.mrf.mxu0
    %v130 = vadd.f32 0.0, %v129
    %v131 = vpop.f32.mrf.mxu0
    %132 = vdwg.mxu0
    %v133 = vadd.f32 %v54, %v130
    %134 = vst [vmem:[#allocation2] sm:$0xff] %v133
    // Predicated region
    $region26: #{_dyn_linear_pallas.1} parent=1 // pred_check
      %p135 = pneg %p45
    $region27: #{_dyn_linear_pallas.1} parent=1 // pred_check_branch
      %137 = sbr.rel (%p135) target = $region29
    $region28: #{_dyn_linear_pallas.1} parent=1 // pred_region
      %v138 = vld [vmem:[#allocation2] sm:$0xff]
      %139 = vst [vmem:[#allocation8] sm:$0xff] %v138
    $region29: #{_dyn_linear_pallas.1} parent=1 // pred_fallthru
      _
    // Predicated region
    $region30: #{_dyn_linear_pallas.1} parent=1 // pred_check
      _
    $region31: #{_dyn_linear_pallas.1} parent=1 // pred_check_branch
      %141 = sbr.rel (0) target = $region33
    $region32: #{_dyn_linear_pallas.1} parent=1 // pred_region
      %143 = vsyncadd [#allocation5], 0
      %s145 = sshll.u32 [#allocation8], 4
      %s146 = int_to_ptr.vmem [resolvable:$true] %s145
      %s147 = sshll.u32 %s3, 4
      %s148 = int_to_ptr.hbm [resolvable:$true] %s147
      %150 = dma.vmem_to_hbm [thread:$0]  %s146, 128, %s148, [#allocation5]
    $region33: #{_dyn_linear_pallas.1} parent=1 // pred_fallthru
      _
    // Predicated region
    $region34: #{_dyn_linear_pallas.1} parent=1 // pred_check
      _
    $region35: #{_dyn_linear_pallas.1} parent=1 // pred_check_branch
      %152 = sbr.rel (0) target = $region37
    $region36: #{_dyn_linear_pallas.1} parent=1 // pred_region
      %154 = dma.done [#allocation5], 128
    $region37: #{_dyn_linear_pallas.1} parent=1 // pred_fallthru
      _
    %155 = vsyncpa [#allocation4], 1
    %156 = vsyncpa [#allocation7], 1
    %157 = vsyncpa [#allocation5], 1

</llo_original>
